<compile_context>
chip_gen: v7x
topology: tpu7x:2x2x1
jax: 0.10.0
libtpu: 0.0.40
codegen_flags: <defaults>
</compile_context>

<pallas_src>
import functools

import numpy as np

import jax
import jax.numpy as jnp
from jax.experimental import pallas as pl
from jax.experimental.pallas import tpu as pltpu


@functools.lru_cache(maxsize=None)
def _pool_constants(H, W):
    """Separable 0/1 pooling matrices + per-window valid-entry count (numpy)."""
    Ho = (H + 2 - 3) // 2 + 1
    Wo = (W + 2 - 3) // 2 + 1
    # Ph[i, h] = 1 iff |h - 2i| <= 1  (3-wide window centered at 2i, pad=1)
    ph = (np.abs(np.arange(H)[None, :] - 2 * np.arange(Ho)[:, None]) <= 1)
    pw = (np.abs(np.arange(W)[None, :] - 2 * np.arange(Wo)[:, None]) <= 1)
    ph = ph.astype(np.float32)                          # [Ho, H]
    pw = pw.astype(np.float32)                          # [Wo, W]
    # count_include_pad=True: window always divides by 9, but the conv bias only
    # appears cnt[i, j] = (#valid rows)*(#valid cols) times in the window sum.
    cnt = ph.sum(1)[:, None] * pw.sum(1)[None, :]       # [Ho, Wo]
    return ph, pw, cnt


def _pick_block_batch(N, Cin, H, W, itemsize):
    """Batch elements per grid step: amortize step overhead, keep >=2 steps
    (one per v7x TensorCore) and fit comfortably in VMEM with double buffering."""
    per_block = Cin * H * W * itemsize
    vmem_cap = max(1, (8 * 1024 * 1024) // (2 * per_block))   # ~8 MiB for x blocks
    target = max(1, N // 2)                                    # keep >= 2 grid steps
    best = 1
    for d in range(1, N + 1):
        if N % d == 0 and d <= target and d <= vmem_cap:
            best = d
    return best


def _cb_kernel(x_ref, pwt_ref, m_ref, bias_ref, g_ref, gt_ref, gam_ref, bet_ref,
               o_ref, *, normalization, negative_slope, eps, inv_hw):
    # x_ref   : [Nb, Cin, H, W]      input block (compute dtype)
    # pwt_ref : [W, Wo]              Pw^T (0/1, compute dtype)
    # m_ref   : [Cout*Ho, Cin*H]     (conv weight ⊗ Ph) / 9    (compute dtype)
    # bias_ref: [Cout*Ho, Wo]        conv bias * valid_count/9 (f32)
    # g_ref   : [Cout, Cout*Ho]      0/1 per-channel segment-sum matrix (f32)
    # gt_ref  : [Cout*Ho, Cout]      G^T (broadcast per-channel scalars to rows)
    # gam_ref : [Cout, 1]            InstanceNorm gamma
    # bet_ref : [Cout, 1]            InstanceNorm beta
    # o_ref   : [Nb, Cout*Ho, Wo]    output block (f32)
    Nb, Cin, H, W = x_ref.shape
    rows = Cin * H

    # ---- W-direction window sums for ALL Nb images in one MXU call.
    # Reshape only collapses leading dims onto the (8-aligned) H sublane dim.
    xall = x_ref[...].reshape(Nb * rows, W)
    t_all = jnp.dot(xall, pwt_ref[...],
                    preferred_element_type=jnp.float32)        # [Nb*Cin*H, Wo]
    t_all = t_all.astype(m_ref.dtype)

    m = m_ref[...]
    bias = bias_ref[...]

    for n in range(Nb):                                         # small static loop
        t_n = t_all[n * rows:(n + 1) * rows, :]                 # [Cin*H, Wo]
        # ---- H-direction window sum + 1x1 conv + 1/9, single MXU call.
        z = jnp.dot(m, t_n, preferred_element_type=jnp.float32) + bias  # [Cout*Ho, Wo]
        # ---- LeakyReLU(0.2)  (f32 VPU math on all generations)
        z = jnp.where(z > 0, z, negative_slope * z)

        if normalization:
            # Per-channel mean / mean-of-squares in one pass.  G sums the Ho row
            # block of each channel (no sublane relayout needed).
            csum = jnp.dot(g_ref[...], z, preferred_element_type=jnp.float32)      # [Cout, Wo]
            csumsq = jnp.dot(g_ref[...], z * z, preferred_element_type=jnp.float32)
            mean = jnp.sum(csum, axis=1, keepdims=True) * inv_hw                    # [Cout, 1]
            meansq = jnp.sum(csumsq, axis=1, keepdims=True) * inv_hw
            var = jnp.maximum(meansq - mean * mean, 0.0)
            scale = gam_ref[...] * jax.lax.rsqrt(var + eps)                          # [Cout, 1]
            shift = bet_ref[...] - mean * scale
            # Broadcast per-channel scale/shift back to the Cout*Ho rows.
            row_scale = jnp.dot(gt_ref[...], scale, preferred_element_type=jnp.float32)
            row_shift = jnp.dot(gt_ref[...], shift, preferred_element_type=jnp.float32)
            z = z * row_scale + row_shift

        o_ref[n] = z.astype(o_ref.dtype)


def cb_forward(x_nchw, conv_w, conv_b, norm_w, norm_b, *, normalization=False,
               negative_slope=0.2, eps=1e-5, compute_dtype=jnp.float32,
               block_batch=None):
    """Forward pass of CB.

    x_nchw : [N, Cin, H, W]
    conv_w : [Cout, Cin]   (PyTorch Conv2d 1x1 weight, squeezed)
    conv_b : [Cout]
    norm_w, norm_b : [Cout]  InstanceNorm affine params (used iff normalization)
    Returns [N, Cout, Ho, Wo] (NCHW), float32.
    """
    N, Cin, H, W = x_nchw.shape
    Cout = conv_w.shape[0]
    ph_np, pw_np, cnt_np = _pool_constants(H, W)
    Ho, Wo = ph_np.shape[0], pw_np.shape[0]

    if block_batch is None:
        block_batch = _pick_block_batch(N, Cin, H, W, jnp.dtype(compute_dtype).itemsize)
    assert N % block_batch == 0
    steps = N // block_batch

    # Constants (computed once per call on the host/XLA side; all tiny).
    pwt = jnp.asarray(pw_np.T, dtype=compute_dtype)                       # [W, Wo]
    m = (jnp.einsum('oc,ih->oich', conv_w.astype(jnp.float32),
                    jnp.asarray(ph_np)) * (1.0 / 9.0))
    m = m.reshape(Cout * Ho, Cin * H).astype(compute_dtype)               # [Cout*Ho, Cin*H]
    bias_cnt = (conv_b.astype(jnp.float32)[:, None, None]
                * jnp.asarray(cnt_np)[None, :, :] * (1.0 / 9.0))
    bias_cnt = bias_cnt.reshape(Cout * Ho, Wo)                            # [Cout*Ho, Wo]
    g_np = np.kron(np.eye(Cout, dtype=np.float32), np.ones((1, Ho), np.float32))
    g = jnp.asarray(g_np)                                                 # [Cout, Cout*Ho]
    gt = jnp.asarray(np.ascontiguousarray(g_np.T))                        # [Cout*Ho, Cout]
    gamma = norm_w.reshape(Cout, 1).astype(jnp.float32)
    beta = norm_b.reshape(Cout, 1).astype(jnp.float32)

    kernel = functools.partial(_cb_kernel, normalization=normalization,
                               negative_slope=negative_slope, eps=eps,
                               inv_hw=1.0 / float(Ho * Wo))

    out2 = pl.pallas_call(
        kernel,
        out_shape=jax.ShapeDtypeStruct((N, Cout * Ho, Wo), jnp.float32),
        grid_spec=pltpu.PrefetchScalarGridSpec(
            num_scalar_prefetch=0,
            grid=(steps,),
            in_specs=[
                pl.BlockSpec((block_batch, Cin, H, W), lambda n: (n, 0, 0, 0)),
                pl.BlockSpec((W, Wo), lambda n: (0, 0)),
                pl.BlockSpec((Cout * Ho, Cin * H), lambda n: (0, 0)),
                pl.BlockSpec((Cout * Ho, Wo), lambda n: (0, 0)),
                pl.BlockSpec((Cout, Cout * Ho), lambda n: (0, 0)),
                pl.BlockSpec((Cout * Ho, Cout), lambda n: (0, 0)),
                pl.BlockSpec((Cout, 1), lambda n: (0, 0)),
                pl.BlockSpec((Cout, 1), lambda n: (0, 0)),
            ],
            out_specs=pl.BlockSpec((block_batch, Cout * Ho, Wo),
                                   lambda n: (n, 0, 0)),
        ),
        compiler_params=pltpu.CompilerParams(
            dimension_semantics=("parallel",),
            vmem_limit_bytes=32 * 1024 * 1024,
        ),
    )(x_nchw.astype(compute_dtype), pwt, m, bias_cnt, g, gt, gamma, beta)

    # Free reshape back to NCHW (trailing-dim split of a contiguous array).
    return out2.reshape(N, Cout, Ho, Wo)


def cb_reference(x, conv_w, conv_b, norm_w, norm_b, *, normalization=False):
    """Pure-JAX reference matching PyTorch CB.forward semantics (NCHW)."""
    y = jnp.einsum('oc,nchw->nohw', conv_w, x) + conv_b[None, :, None, None]
    s = jax.lax.reduce_window(y, 0.0, jax.lax.add,
                              window_dimensions=(1, 1, 3, 3),
                              window_strides=(1, 1, 2, 2),
                              padding=((0, 0), (0, 0), (1, 1), (1, 1)))
    pooled = s / 9.0                                  # count_include_pad=True
    z = jnp.where(pooled > 0, pooled, 0.2 * pooled)   # LeakyReLU(0.2)
    if normalization:
        mean = z.mean(axis=(2, 3), keepdims=True)
        var = ((z - mean) ** 2).mean(axis=(2, 3), keepdims=True)
        z = (z - mean) * jax.lax.rsqrt(var + 1e-5)
        z = z * norm_w[None, :, None, None] + norm_b[None, :, None, None]
    return z


if __name__ == "__main__":
    key = jax.random.PRNGKey(0)
    k_x, k_w, k_b, k_g, k_bt = jax.random.split(key, 5)

    N, Cin, Cout, H, W = 2, 4, 8, 16, 16
    x = jax.random.normal(k_x, (N, Cin, H, W), dtype=jnp.float32)
    conv_w = jax.random.normal(k_w, (Cout, Cin), dtype=jnp.float32) * 0.2
    conv_b = jax.random.normal(k_b, (Cout,), dtype=jnp.float32) * 0.1
    norm_w = jax.random.normal(k_g, (Cout,), dtype=jnp.float32) * 0.5 + 1.0
    norm_b = jax.random.normal(k_bt, (Cout,), dtype=jnp.float32) * 0.1

    ok = True
    for normalization in (False, True):
        out = cb_forward(x, conv_w, conv_b, norm_w, norm_b,
                         normalization=normalization)
        out = jax.block_until_ready(out)
        ref = cb_reference(x, conv_w, conv_b, norm_w, norm_b,
                           normalization=normalization)
        err = float(jnp.max(jnp.abs(out - ref)))
        if not jnp.allclose(out, ref, atol=1e-3, rtol=1e-3):
            ok = False
            print("MISMATCH (normalization=%s): max abs err %e" %
                  (normalization, err))

    if ok:
        print("KERNEL_OK")
</pallas_src>

<mosaic_0001>
module attributes {stable_mosaic.version = 11 : i64} {
  func.func @_cb_kernel(%arg0: i32, %arg1: memref<1x4x16x16xf32, #tpu.memory_space<vmem>>, %arg2: memref<16x8xf32, #tpu.memory_space<vmem>>, %arg3: memref<64x64xf32, #tpu.memory_space<vmem>>, %arg4: memref<64x8xf32, #tpu.memory_space<vmem>>, %arg5: memref<8x64xf32, #tpu.memory_space<vmem>>, %arg6: memref<64x8xf32, #tpu.memory_space<vmem>>, %arg7: memref<8x1xf32, #tpu.memory_space<vmem>>, %arg8: memref<8x1xf32, #tpu.memory_space<vmem>>, %arg9: memref<1x64x8xf32, #tpu.memory_space<vmem>>) attributes {dimension_semantics = [#tpu.dimension_semantics<parallel>], iteration_bounds = array<i64: 2>, scalar_prefetch = 0 : i64, scratch_operands = 0 : i64, tpu.core_type = #tpu.core_type<tc>, window_params = [{transform_indices = @transform_0, window_bounds = array<i64: 1, 4, 16, 16>}, {pipeline_mode = #tpu.pipeline_mode<synchronous>, transform_indices = @transform_1, window_bounds = array<i64: 16, 8>}, {pipeline_mode = #tpu.pipeline_mode<synchronous>, transform_indices = @transform_2, window_bounds = array<i64: 64, 64>}, {pipeline_mode = #tpu.pipeline_mode<synchronous>, transform_indices = @transform_3, window_bounds = array<i64: 64, 8>}, {pipeline_mode = #tpu.pipeline_mode<synchronous>, transform_indices = @transform_4, window_bounds = array<i64: 8, 64>}, {pipeline_mode = #tpu.pipeline_mode<synchronous>, transform_indices = @transform_5, window_bounds = array<i64: 64, 8>}, {pipeline_mode = #tpu.pipeline_mode<synchronous>, transform_indices = @transform_6, window_bounds = array<i64: 8, 1>}, {pipeline_mode = #tpu.pipeline_mode<synchronous>, transform_indices = @transform_7, window_bounds = array<i64: 8, 1>}, {transform_indices = @transform_8, window_bounds = array<i64: 1, 64, 8>}]} {
    %c0 = arith.constant 0 : index
    %c0_0 = arith.constant 0 : index
    %c0_1 = arith.constant 0 : index
    %c0_2 = arith.constant 0 : index
    %0 = vector.load %arg1[%c0, %c0_0, %c0_1, %c0_2] : memref<1x4x16x16xf32, #tpu.memory_space<vmem>>, vector<1x4x16x16xf32>
    %1 = vector.shape_cast %0 : vector<1x4x16x16xf32> to vector<64x16xf32>
    %c0_3 = arith.constant 0 : index
    %c0_4 = arith.constant 0 : index
    %2 = vector.load %arg2[%c0_3, %c0_4] : memref<16x8xf32, #tpu.memory_space<vmem>>, vector<16x8xf32>
    %cst = arith.constant dense<0.000000e+00> : vector<64x8xf32>
    %3 = tpu.matmul %1, %2, %cst {dimension_numbers = #tpu.dot_dimension_numbers<[1], [0], [0], [1], [0, 0, 1, 1], [], []>} : vector<64x16xf32>, vector<16x8xf32>, vector<64x8xf32> -> vector<64x8xf32>
    %c0_5 = arith.constant 0 : index
    %c0_6 = arith.constant 0 : index
    %4 = vector.load %arg3[%c0_5, %c0_6] : memref<64x64xf32, #tpu.memory_space<vmem>>, vector<64x64xf32>
    %c0_7 = arith.constant 0 : index
    %c0_8 = arith.constant 0 : index
    %5 = vector.load %arg4[%c0_7, %c0_8] : memref<64x8xf32, #tpu.memory_space<vmem>>, vector<64x8xf32>
    %cst_9 = arith.constant dense<0.000000e+00> : vector<64x8xf32>
    %6 = tpu.matmul %4, %3, %cst_9 {dimension_numbers = #tpu.dot_dimension_numbers<[1], [0], [0], [1], [0, 0, 1, 1], [], []>} : vector<64x64xf32>, vector<64x8xf32>, vector<64x8xf32> -> vector<64x8xf32>
    %7 = arith.addf %6, %5 : vector<64x8xf32>
    %cst_10 = arith.constant 0.000000e+00 : f32
    %8 = vector.broadcast %cst_10 : f32 to vector<64x8xf32>
    %9 = arith.cmpf ogt, %7, %8 : vector<64x8xf32>
    %cst_11 = arith.constant 2.000000e-01 : f32
    %10 = vector.broadcast %cst_11 : f32 to vector<64x8xf32>
    %11 = arith.mulf %10, %7 : vector<64x8xf32>
    %12 = arith.select %9, %7, %11 : vector<64x8xi1>, vector<64x8xf32>
    %c0_12 = arith.constant 0 : index
    %c0_13 = arith.constant 0 : index
    %c0_14 = arith.constant 0 : index
    %13 = vector.load %arg9[%c0_12, %c0_13, %c0_14] : memref<1x64x8xf32, #tpu.memory_space<vmem>>, vector<1x64x8xf32>
    %14 = vector.shape_cast %13 : vector<1x64x8xf32> to vector<64x8xf32>
    %15 = vector.shape_cast %12 : vector<64x8xf32> to vector<1x64x8xf32>
    tpu.vector_store %arg9[%c0_12, %c0_13, %c0_14], %15 {strides = array<i32>} : memref<1x64x8xf32, #tpu.memory_space<vmem>>, vector<1x64x8xf32>,
    return
  }
  func.func @transform_0(%arg0: i32) -> (i32, i32, i32, i32) {
    %c0_i32 = arith.constant 0 : i32
    %c0_i32_0 = arith.constant 0 : i32
    %c0_i32_1 = arith.constant 0 : i32
    %c0_i32_2 = arith.constant 0 : i32
    return %arg0, %c0_i32, %c0_i32_0, %c0_i32_1 : i32, i32, i32, i32
  }
  func.func @transform_1(%arg0: i32) -> (i32, i32) {
    %c0_i32 = arith.constant 0 : i32
    %c0_i32_0 = arith.constant 0 : i32
    %c0_i32_1 = arith.constant 0 : i32
    return %c0_i32, %c0_i32_0 : i32, i32
  }
  func.func @transform_2(%arg0: i32) -> (i32, i32) {
    %c0_i32 = arith.constant 0 : i32
    %c0_i32_0 = arith.constant 0 : i32
    %c0_i32_1 = arith.constant 0 : i32
    return %c0_i32, %c0_i32_0 : i32, i32
  }
  func.func @transform_3(%arg0: i32) -> (i32, i32) {
    %c0_i32 = arith.constant 0 : i32
    %c0_i32_0 = arith.constant 0 : i32
    %c0_i32_1 = arith.constant 0 : i32
    return %c0_i32, %c0_i32_0 : i32, i32
  }
  func.func @transform_4(%arg0: i32) -> (i32, i32) {
    %c0_i32 = arith.constant 0 : i32
    %c0_i32_0 = arith.constant 0 : i32
    %c0_i32_1 = arith.constant 0 : i32
    return %c0_i32, %c0_i32_0 : i32, i32
  }
  func.func @transform_5(%arg0: i32) -> (i32, i32) {
    %c0_i32 = arith.constant 0 : i32
    %c0_i32_0 = arith.constant 0 : i32
    %c0_i32_1 = arith.constant 0 : i32
    return %c0_i32, %c0_i32_0 : i32, i32
  }
  func.func @transform_6(%arg0: i32) -> (i32, i32) {
    %c0_i32 = arith.constant 0 : i32
    %c0_i32_0 = arith.constant 0 : i32
    %c0_i32_1 = arith.constant 0 : i32
    return %c0_i32, %c0_i32_0 : i32, i32
  }
  func.func @transform_7(%arg0: i32) -> (i32, i32) {
    %c0_i32 = arith.constant 0 : i32
    %c0_i32_0 = arith.constant 0 : i32
    %c0_i32_1 = arith.constant 0 : i32
    return %c0_i32, %c0_i32_0 : i32, i32
  }
  func.func @transform_8(%arg0: i32) -> (i32, i32, i32) {
    %c0_i32 = arith.constant 0 : i32
    %c0_i32_0 = arith.constant 0 : i32
    %c0_i32_1 = arith.constant 0 : i32
    return %arg0, %c0_i32, %c0_i32_0 : i32, i32, i32
  }
}

</mosaic_0001>

<llo_original>
// kernel: tpu_custom_call.1
$region0: #{tpu_custom_call.1}
  #allocation0 [shape = 'u32[]', space=smem, size = 0x4, offset = 0x4, fixed_abs, tag = 'smem constant byte address 0x4 - core index']
  #allocation1 [shape = 'u32[144,128]{1,0:T(1,128)}', space=vmem, size = 0x12000, scoped, tag = 'internal scratch']
  %s0 = inlined_call_operand.vmem [shape: f32[2,4,16,16], index: 0, kind: input, shape index: {}]
  %s1 = inlined_call_operand.vmem [shape: f32[16,8], index: 1, kind: input, shape index: {}]
  %s2 = inlined_call_operand.vmem [shape: f32[64,64], index: 2, kind: input, shape index: {}]
  %s3 = inlined_call_operand.vmem [shape: f32[64,8], index: 3, kind: input, shape index: {}]
  %s4 = inlined_call_operand.vmem [shape: f32[8,64], index: 4, kind: input, shape index: {}]
  %s5 = inlined_call_operand.vmem [shape: f32[64,8], index: 5, kind: input, shape index: {}]
  %s6 = inlined_call_operand.vmem [shape: f32[8,1], index: 6, kind: input, shape index: {}]
  %s7 = inlined_call_operand.vmem [shape: f32[8,1], index: 7, kind: input, shape index: {}]
  %s8 = inlined_call_operand.vmem [shape: f32[2,64,8], index: 8, kind: output, shape index: {}]
  %s9 = sld [smem:[#allocation0]]
  $region65: #{tpu_custom_call.1} parent=0
    _
  %s11 = ssub.s32 1, %s9
  %s12 = scalar_select 0, %s11, %s9
  loop: start=0, step=1, limit=4
  $region2: #{tpu_custom_call.1} parent=0 // loop_pre_header
    _
  $region3: #{tpu_custom_call.1} parent=0 // loop_header
    %s14 = sphi 0, %s18
    %p15 = scmp.ge.s32.totalorder %s14, 4
    %s24 = sphi 0, %s26
    %s27 = sphi 0, %s24
    %s28 = sphi 0, %s27
    %s44 = sphi 0, %s28
    %s48 = sphi 0, %s48
    %s50 = sphi 0, %s48
    %s51 = sphi 0, %s50
    %s65 = sphi 0, %s51
    %s69 = sphi 0, %s69
    %s71 = sphi 0, %s69
    %s72 = sphi 0, %s71
    %s86 = sphi 0, %s72
    %s90 = sphi 0, %s90
    %s92 = sphi 0, %s90
    %s93 = sphi 0, %s92
    %s107 = sphi 0, %s93
    %s111 = sphi 0, %s111
    %s113 = sphi 0, %s111
    %s114 = sphi 0, %s113
    %s128 = sphi 0, %s114
    %s132 = sphi 0, %s132
    %s134 = sphi 0, %s132
    %s135 = sphi 0, %s134
    %s149 = sphi 0, %s135
    %s153 = sphi 0, %s153
    %s155 = sphi 0, %s153
    %s156 = sphi 0, %s155
    %s170 = sphi 0, %s156
    %s174 = sphi 0, %s174
    %s176 = sphi 0, %s174
    %s177 = sphi 0, %s176
    %s191 = sphi 0, %s177
    %s197 = sphi 0, %s199
    %s200 = sphi 0, %s197
    %s201 = sphi 0, %s200
    %s217 = sphi 0, %s201
  $region4: #{tpu_custom_call.1} parent=0 // loop_header_branch
    %17 = sbr.rel (%p15) target = $region8
  $region5: #{tpu_custom_call.1} parent=0 // loop_body
    %s19 = ssub.s32 %s14, 1
    %s20 = ssub.s32 %s14, 2
    %s21 = sadd.s32 %s14, 1
    %s22 = ssub.s32 %s14, %s21
    %p23 = scmp.eq.s32.totalorder %s22, 0
    %s25 = sadd.s32 %s24, 1
    %s26 = scalar_select %p23, %s24, %s25
    %p29 = pneg %p23
    %p30 = scmp.eq.s32.totalorder %s14, 1
    %p31 = por %p29, %p30
    %p32 = scmp.ne.s32.totalorder %s24, %s27
    %p33 = scmp.eq.s32.totalorder %s14, 0
    %p34 = por %p32, %p33
    %p35 = scmp.ne.s32.totalorder %s24, %s27
    %p36 = scmp.eq.s32.totalorder %s19, 1
    %p37 = por %p35, %p36
    %p38 = scmp.ne.s32.totalorder %s27, %s28
    %p39 = scmp.eq.s32.totalorder %s19, 0
    %p40 = por %p38, %p39
    %p41 = scmp.ne.s32.totalorder %s27, %s28
    %p42 = scmp.eq.s32.totalorder %s20, 1
    %p43 = por %p41, %p42
    %p45 = scmp.ne.s32.totalorder %s28, %s44
    %p46 = scmp.eq.s32.totalorder %s20, 0
    %p47 = por %p45, %p46
    %s49 = sadd.s32 %s48, 1
    %p52 = scmp.eq.s32.totalorder %s14, 1
    %p53 = scmp.ne.s32.totalorder %s48, %s50
    %p54 = scmp.eq.s32.totalorder %s14, 0
    %p55 = por %p53, %p54
    %p56 = scmp.ne.s32.totalorder %s48, %s50
    %p57 = scmp.eq.s32.totalorder %s19, 1
    %p58 = por %p56, %p57
    %p59 = scmp.ne.s32.totalorder %s50, %s51
    %p60 = scmp.eq.s32.totalorder %s19, 0
    %p61 = por %p59, %p60
    %p62 = scmp.ne.s32.totalorder %s50, %s51
    %p63 = scmp.eq.s32.totalorder %s20, 1
    %p64 = por %p62, %p63
    %p66 = scmp.ne.s32.totalorder %s51, %s65
    %p67 = scmp.eq.s32.totalorder %s20, 0
    %p68 = por %p66, %p67
    %s70 = sadd.s32 %s69, 1
    %p73 = scmp.eq.s32.totalorder %s14, 1
    %p74 = scmp.ne.s32.totalorder %s69, %s71
    %p75 = scmp.eq.s32.totalorder %s14, 0
    %p76 = por %p74, %p75
    %p77 = scmp.ne.s32.totalorder %s69, %s71
    %p78 = scmp.eq.s32.totalorder %s19, 1
    %p79 = por %p77, %p78
    %p80 = scmp.ne.s32.totalorder %s71, %s72
    %p81 = scmp.eq.s32.totalorder %s19, 0
    %p82 = por %p80, %p81
    %p83 = scmp.ne.s32.totalorder %s71, %s72
    %p84 = scmp.eq.s32.totalorder %s20, 1
    %p85 = por %p83, %p84
    %p87 = scmp.ne.s32.totalorder %s72, %s86
    %p88 = scmp.eq.s32.totalorder %s20, 0
    %p89 = por %p87, %p88
    %s91 = sadd.s32 %s90, 1
    %p94 = scmp.eq.s32.totalorder %s14, 1
    %p95 = scmp.ne.s32.totalorder %s90, %s92
    %p96 = scmp.eq.s32.totalorder %s14, 0
    %p97 = por %p95, %p96
    %p98 = scmp.ne.s32.totalorder %s90, %s92
    %p99 = scmp.eq.s32.totalorder %s19, 1
    %p100 = por %p98, %p99
    %p101 = scmp.ne.s32.totalorder %s92, %s93
    %p102 = scmp.eq.s32.totalorder %s19, 0
    %p103 = por %p101, %p102
    %p104 = scmp.ne.s32.totalorder %s92, %s93
    %p105 = scmp.eq.s32.totalorder %s20, 1
    %p106 = por %p104, %p105
    %p108 = scmp.ne.s32.totalorder %s93, %s107
    %p109 = scmp.eq.s32.totalorder %s20, 0
    %p110 = por %p108, %p109
    %s112 = sadd.s32 %s111, 1
    %p115 = scmp.eq.s32.totalorder %s14, 1
    %p116 = scmp.ne.s32.totalorder %s111, %s113
    %p117 = scmp.eq.s32.totalorder %s14, 0
    %p118 = por %p116, %p117
    %p119 = scmp.ne.s32.totalorder %s111, %s113
    %p120 = scmp.eq.s32.totalorder %s19, 1
    %p121 = por %p119, %p120
    %p122 = scmp.ne.s32.totalorder %s113, %s114
    %p123 = scmp.eq.s32.totalorder %s19, 0
    %p124 = por %p122, %p123
    %p125 = scmp.ne.s32.totalorder %s113, %s114
    %p126 = scmp.eq.s32.totalorder %s20, 1
    %p127 = por %p125, %p126
    %p129 = scmp.ne.s32.totalorder %s114, %s128
    %p130 = scmp.eq.s32.totalorder %s20, 0
    %p131 = por %p129, %p130
    %s133 = sadd.s32 %s132, 1
    %p136 = scmp.eq.s32.totalorder %s14, 1
    %p137 = scmp.ne.s32.totalorder %s132, %s134
    %p138 = scmp.eq.s32.totalorder %s14, 0
    %p139 = por %p137, %p138
    %p140 = scmp.ne.s32.totalorder %s132, %s134
    %p141 = scmp.eq.s32.totalorder %s19, 1
    %p142 = por %p140, %p141
    %p143 = scmp.ne.s32.totalorder %s134, %s135
    %p144 = scmp.eq.s32.totalorder %s19, 0
    %p145 = por %p143, %p144
    %p146 = scmp.ne.s32.totalorder %s134, %s135
    %p147 = scmp.eq.s32.totalorder %s20, 1
    %p148 = por %p146, %p147
    %p150 = scmp.ne.s32.totalorder %s135, %s149
    %p151 = scmp.eq.s32.totalorder %s20, 0
    %p152 = por %p150, %p151
    %s154 = sadd.s32 %s153, 1
    %p157 = scmp.eq.s32.totalorder %s14, 1
    %p158 = scmp.ne.s32.totalorder %s153, %s155
    %p159 = scmp.eq.s32.totalorder %s14, 0
    %p160 = por %p158, %p159
    %p161 = scmp.ne.s32.totalorder %s153, %s155
    %p162 = scmp.eq.s32.totalorder %s19, 1
    %p163 = por %p161, %p162
    %p164 = scmp.ne.s32.totalorder %s155, %s156
    %p165 = scmp.eq.s32.totalorder %s19, 0
    %p166 = por %p164, %p165
    %p167 = scmp.ne.s32.totalorder %s155, %s156
    %p168 = scmp.eq.s32.totalorder %s20, 1
    %p169 = por %p167, %p168
    %p171 = scmp.ne.s32.totalorder %s156, %s170
    %p172 = scmp.eq.s32.totalorder %s20, 0
    %p173 = por %p171, %p172
    %s175 = sadd.s32 %s174, 1
    %p178 = scmp.eq.s32.totalorder %s14, 1
    %p179 = scmp.ne.s32.totalorder %s174, %s176
    %p180 = scmp.eq.s32.totalorder %s14, 0
    %p181 = por %p179, %p180
    %p182 = scmp.ne.s32.totalorder %s174, %s176
    %p183 = scmp.eq.s32.totalorder %s19, 1
    %p184 = por %p182, %p183
    %p185 = scmp.ne.s32.totalorder %s176, %s177
    %p186 = scmp.eq.s32.totalorder %s19, 0
    %p187 = por %p185, %p186
    %p188 = scmp.ne.s32.totalorder %s176, %s177
    %p189 = scmp.eq.s32.totalorder %s20, 1
    %p190 = por %p188, %p189
    %p192 = scmp.ne.s32.totalorder %s177, %s191
    %p193 = scmp.eq.s32.totalorder %s20, 0
    %p194 = por %p192, %p193
    %s195 = ssub.s32 %s14, %s21
    %p196 = scmp.eq.s32.totalorder %s195, 0
    %s198 = sadd.s32 %s197, 1
    %s199 = scalar_select %p196, %s197, %s198
    %p202 = pneg %p196
    %p203 = scmp.eq.s32.totalorder %s14, 1
    %p204 = por %p202, %p203
    %p205 = scmp.ne.s32.totalorder %s197, %s200
    %p206 = scmp.eq.s32.totalorder %s14, 0
    %p207 = por %p205, %p206
    %p208 = scmp.ne.s32.totalorder %s197, %s200
    %p209 = scmp.eq.s32.totalorder %s19, 1
    %p210 = por %p208, %p209
    %p211 = scmp.ne.s32.totalorder %s200, %s201
    %p212 = scmp.eq.s32.totalorder %s19, 0
    %p213 = por %p211, %p212
    %p214 = scmp.ne.s32.totalorder %s200, %s201
    %p215 = scmp.eq.s32.totalorder %s20, 1
    %p216 = por %p214, %p215
    %p218 = scmp.ne.s32.totalorder %s201, %s217
    %p219 = scmp.eq.s32.totalorder %s20, 0
    %p220 = por %p218, %p219
    %p221 = scmp.le.s32.totalorder 1, %s14
    %p222 = scmp.lt.s32.totalorder %s14, 3
    %p223 = pnand %p221, %p222
    %p224 = pneg %p223
    // Predicated region
    $region9: #{tpu_custom_call.1} parent=5 // pred_check
      _
    $region10: #{tpu_custom_call.1} parent=5 // pred_check_branch
      %226 = sbr.rel (%p223) target = $region12
    $region11: #{tpu_custom_call.1} parent=5 // pred_region
      %s227 = ssub.s32 %s14, 1
      // Predicated region
      $region13: #{tpu_custom_call.1} parent=11 // pred_check
        %p228 = pneg %p61
      $region14: #{tpu_custom_call.1} parent=11 // pred_check_branch
        %230 = sbr.rel (%p228) target = $region16
      $region15: #{tpu_custom_call.1} parent=11 // pred_region
        _
      $region16: #{tpu_custom_call.1} parent=11 // pred_fallthru
        _
      // Predicated region
      $region17: #{tpu_custom_call.1} parent=11 // pred_check
        %p231 = pneg %p82
      $region18: #{tpu_custom_call.1} parent=11 // pred_check_branch
        %233 = sbr.rel (%p231) target = $region20
      $region19: #{tpu_custom_call.1} parent=11 // pred_region
        _
      $region20: #{tpu_custom_call.1} parent=11 // pred_fallthru
        _
      // Predicated region
      $region21: #{tpu_custom_call.1} parent=11 // pred_check
        %p234 = pneg %p103
      $region22: #{tpu_custom_call.1} parent=11 // pred_check_branch
        %236 = sbr.rel (%p234) target = $region24
      $region23: #{tpu_custom_call.1} parent=11 // pred_region
        _
      $region24: #{tpu_custom_call.1} parent=11 // pred_fallthru
        _
      // Predicated region
      $region25: #{tpu_custom_call.1} parent=11 // pred_check
        %p237 = pneg %p124
      $region26: #{tpu_custom_call.1} parent=11 // pred_check_branch
        %239 = sbr.rel (%p237) target = $region28
      $region27: #{tpu_custom_call.1} parent=11 // pred_region
        _
      $region28: #{tpu_custom_call.1} parent=11 // pred_fallthru
        _
      // Predicated region
      $region29: #{tpu_custom_call.1} parent=11 // pred_check
        %p240 = pneg %p145
      $region30: #{tpu_custom_call.1} parent=11 // pred_check_branch
        %242 = sbr.rel (%p240) target = $region32
      $region31: #{tpu_custom_call.1} parent=11 // pred_region
        _
      $region32: #{tpu_custom_call.1} parent=11 // pred_fallthru
        _
      // Predicated region
      $region33: #{tpu_custom_call.1} parent=11 // pred_check
        %p243 = pneg %p166
      $region34: #{tpu_custom_call.1} parent=11 // pred_check_branch
        %245 = sbr.rel (%p243) target = $region36
      $region35: #{tpu_custom_call.1} parent=11 // pred_region
        _
      $region36: #{tpu_custom_call.1} parent=11 // pred_fallthru
        _
      // Predicated region
      $region37: #{tpu_custom_call.1} parent=11 // pred_check
        %p246 = pneg %p187
      $region38: #{tpu_custom_call.1} parent=11 // pred_check_branch
        %248 = sbr.rel (%p246) target = $region40
      $region39: #{tpu_custom_call.1} parent=11 // pred_region
        _
      $region40: #{tpu_custom_call.1} parent=11 // pred_fallthru
        _
    $region12: #{tpu_custom_call.1} parent=5 // pred_fallthru
      _
    %p249 = scmp.lt.s32.totalorder %s14, 2
    // Predicated region
    $region41: #{tpu_custom_call.1} parent=5 // pred_check
      %p250 = pneg %p249
    $region42: #{tpu_custom_call.1} parent=5 // pred_check_branch
      %252 = sbr.rel (%p250) target = $region44
    $region43: #{tpu_custom_call.1} parent=5 // pred_region
      // Predicated region
      $region45: #{tpu_custom_call.1} parent=43 // pred_check
        %p253 = pneg %p34
      $region46: #{tpu_custom_call.1} parent=43 // pred_check_branch
        %255 = sbr.rel (%p253) target = $region48
      $region47: #{tpu_custom_call.1} parent=43 // pred_region
        %p256 = scmp.lt.s32.totalorder %s14, 1
        %s257 = scalar_select %p256, %s14, 1
        %s258 = smul.addr %s257, 8
        %s259 = smul.addr %s258, 8
        %s260 = scalar_lea.vmem %s0, %s259
      $region48: #{tpu_custom_call.1} parent=43 // pred_fallthru
        _
    $region44: #{tpu_custom_call.1} parent=5 // pred_fallthru
      _
    %p261 = scmp.le.s32.totalorder 1, %s14
    %p262 = scmp.lt.s32.totalorder %s14, 3
    %p263 = pnand %p261, %p262
    %p264 = pneg %p263
    // Predicated region
    $region49: #{tpu_custom_call.1} parent=5 // pred_check
      _
    $region50: #{tpu_custom_call.1} parent=5 // pred_check_branch
      %266 = sbr.rel (%p263) target = $region52
    $region51: #{tpu_custom_call.1} parent=5 // pred_region
      %s267 = ssub.s32 %s14, 1
      %p268 = scmp.lt.s32.totalorder %s19, 1
      %s269 = scalar_select %p268, %s19, 1
      %s270 = smul.addr %s269, 8
      %s271 = smul.addr %s270, 8
      %s272 = scalar_lea.vmem %s0, %s271
      %p273 = pneg %p40
      %p274 = pneg %p37
      %p275 = pneg %p61
      %p276 = pneg %p58
      %p277 = pneg %p82
      %p278 = pneg %p79
      %p279 = pneg %p103
      %p280 = pneg %p100
      %p281 = pneg %p124
      %p282 = pneg %p121
      %p283 = pneg %p145
      %p284 = pneg %p142
      %p285 = pneg %p166
      %p286 = pneg %p163
      %p287 = pneg %p187
      %p288 = pneg %p184
      %p289 = pneg %p213
      %p290 = pneg %p210
      %p291 = scmp.lt.s32.totalorder %s19, 1
      %s292 = scalar_select %p291, %s19, 1
      %s293 = smul.addr %s292, 8
      %s294 = smul.addr %s293, 8
      %s295 = scalar_lea.vmem %s8, %s294
      %p296 = scmp.lt.s32.totalorder %s19, 1
      %s297 = scalar_select %p296, %s19, 1
      %s298 = smul.addr %s297, 8
      %s299 = smul.addr %s298, 8
      %s300 = scalar_lea.vmem %s0, %s299
      %p301 = scmp.lt.s32.totalorder %s19, 1
      %s302 = scalar_select %p301, %s19, 1
      %s303 = smul.addr %s302, 8
      %s304 = smul.addr %s303, 8
      %s305 = scalar_lea.vmem %s8, %s304
      %v306 = vld [vmem:[%s300] sm:$0xff]
      %v307 = vld [vmem:[%s300 + $0x8] sm:$0xff]
      %v308 = vld [vmem:[%s300 + $0x10] sm:$0xff]
      %v309 = vld [vmem:[%s300 + $0x18] sm:$0xff]
      %v310 = vld [vmem:[%s300 + $0x20] sm:$0xff]
      %v311 = vld [vmem:[%s300 + $0x28] sm:$0xff]
      %v312 = vld [vmem:[%s300 + $0x30] sm:$0xff]
      %v313 = vld [vmem:[%s300 + $0x38] sm:$0xff]
      %v314 = vld [vmem:[%s1] sm:$0xff]
      %v315 = vld [vmem:[%s1 + $0x8] sm:$0xff]
      %vm316 = vcmask 130048
      %v318 = vsel %vm316, %v306, 0
      %v321 = vsel %vm316, %v307, 0
      %v324 = vsel %vm316, %v308, 0
      %v327 = vsel %vm316, %v309, 0
      %v330 = vsel %vm316, %v310, 0
      %v333 = vsel %vm316, %v311, 0
      %v336 = vsel %vm316, %v312, 0
      %v339 = vsel %vm316, %v313, 0
      %341 = vmatprep.subr.mxu0 0.0
      %342 = vmatpush1.msra.mxu0 %v314
      %343 = vmatprep.subr.mxu0 0.0
      %344 = vmatpush1.msra.mxu0 %v315
      %345 = vmatprep.subr.mxu0 0.0
      %346 = vmatpush1.msra.mxu0 0.0
      %347 = vmatprep.subr.mxu0 0.0
      %348 = vmatpush1.msra.mxu0 0.0
      %349 = vmatprep.subr.mxu0 0.0
      %350 = vmatpush1.msra.mxu0 0.0
      %351 = vmatprep.subr.mxu0 0.0
      %352 = vmatpush1.msra.mxu0 0.0
      %353 = vmatprep.subr.mxu0 0.0
      %354 = vmatpush1.msra.mxu0 0.0
      %355 = vmatprep.subr.mxu0 0.0
      %356 = vmatpush1.msra.mxu0 0.0
      %357 = vmatprep.subr.mxu0 0.0
      %358 = vmatpush1.msra.mxu0 0.0
      %359 = vmatprep.subr.mxu0 0.0
      %360 = vmatpush1.msra.mxu0 0.0
      %361 = vmatprep.subr.mxu0 0.0
      %362 = vmatpush1.msra.mxu0 0.0
      %363 = vmatprep.subr.mxu0 0.0
      %364 = vmatpush1.msra.mxu0 0.0
      %365 = vmatprep.subr.mxu0 0.0
      %366 = vmatpush1.msra.mxu0 0.0
      %367 = vmatprep.subr.mxu0 0.0
      %368 = vmatpush1.msra.mxu0 0.0
      %369 = vmatprep.subr.mxu0 0.0
      %370 = vmatpush1.msra.mxu0 0.0
      %371 = vmatprep.subr.mxu0 0.0
      %372 = vmatpush1.msra.mxu0 0.0
      %373 = vmatprep.subr.mxu0 0.0
      %374 = vmatpush1.msra.mxu0 0.0
      %375 = vmatprep.subr.mxu0 0.0
      %376 = vmatpush1.msra.mxu0 0.0
      %377 = vmatprep.subr.mxu0 0.0
      %378 = vmatpush1.msra.mxu0 0.0
      %379 = vmatprep.subr.mxu0 0.0
      %380 = vmatpush1.msra.mxu0 0.0
      %381 = vmatprep.subr.mxu0 0.0
      %382 = vmatpush1.msra.mxu0 0.0
      %383 = vmatprep.subr.mxu0 0.0
      %384 = vmatpush1.msra.mxu0 0.0
      %385 = vmatprep.subr.mxu0 0.0
      %386 = vmatpush1.msra.mxu0 0.0
      %387 = vmatprep.subr.mxu0 0.0
      %388 = vmatpush1.msra.mxu0 0.0
      %389 = vmatprep.subr.mxu0 0.0
      %390 = vmatpush1.msra.mxu0 0.0
      %391 = vmatprep.subr.mxu0 0.0
      %392 = vmatpush1.msra.mxu0 0.0
      %393 = vmatprep.subr.mxu0 0.0
      %394 = vmatpush1.msra.mxu0 0.0
      %395 = vmatprep.subr.mxu0 0.0
      %396 = vmatpush1.msra.mxu0 0.0
      %397 = vmatprep.subr.mxu0 0.0
      %398 = vmatpush1.msra.mxu0 0.0
      %399 = vmatprep.subr.mxu0 0.0
      %400 = vmatpush1.msra.mxu0 0.0
      %401 = vmatprep.subr.mxu0 0.0
      %402 = vmatpush1.msra.mxu0 0.0
      %403 = vmatprep.subr.mxu0 0.0
      %404 = vmatpush1.msra.mxu0 0.0
      %405 = vmatprep.mubr.f32.mxu0 0.0
      %406 = vmatmul.mubr.f32.gmra.mrb[0].mxu0 %v318
      %v407 = vpop.f32.mrb[0].mxu0
      %v408 = vadd.f32 0.0, %v407
      %v409 = vpop.f32.mrb[0].mxu0
      %410 = vmatprep.mubr.f32.mxu0 0.0
      %411 = vmatmul.mubr.f32.gmra.mrb[0].mxu0 %v321
      %v412 = vpop.f32.mrb[0].mxu0
      %v413 = vadd.f32 0.0, %v412
      %v414 = vpop.f32.mrb[0].mxu0
      %415 = vmatprep.mubr.f32.mxu0 0.0
      %416 = vmatmul.mubr.f32.gmra.mrb[0].mxu0 %v324
      %v417 = vpop.f32.mrb[0].mxu0
      %v418 = vadd.f32 0.0, %v417
      %v419 = vpop.f32.mrb[0].mxu0
      %420 = vmatprep.mubr.f32.mxu0 0.0
      %421 = vmatmul.mubr.f32.gmra.mrb[0].mxu0 %v327
      %v422 = vpop.f32.mrb[0].mxu0
      %v423 = vadd.f32 0.0, %v422
      %v424 = vpop.f32.mrb[0].mxu0
      %425 = vmatprep.mubr.f32.mxu0 0.0
      %426 = vmatmul.mubr.f32.gmra.mrb[0].mxu0 %v330
      %v427 = vpop.f32.mrb[0].mxu0
      %v428 = vadd.f32 0.0, %v427
      %v429 = vpop.f32.mrb[0].mxu0
      %430 = vmatprep.mubr.f32.mxu0 0.0
      %431 = vmatmul.mubr.f32.gmra.mrb[0].mxu0 %v333
      %v432 = vpop.f32.mrb[0].mxu0
      %v433 = vadd.f32 0.0, %v432
      %v434 = vpop.f32.mrb[0].mxu0
      %435 = vmatprep.mubr.f32.mxu0 0.0
      %436 = vmatmul.mubr.f32.gmra.mrb[0].mxu0 %v336
      %v437 = vpop.f32.mrb[0].mxu0
      %v438 = vadd.f32 0.0, %v437
      %v439 = vpop.f32.mrb[0].mxu0
      %440 = vmatprep.mubr.f32.mxu0 0.0
      %441 = vmatmul.mubr.f32.gmra.mrb[0].mxu0 %v339
      %v442 = vpop.f32.mrb[0].mxu0
      %v443 = vadd.f32 0.0, %v442
      %v444 = vpop.f32.mrb[0].mxu0
      %445 = vdwg.mxu0
      %v446 = vld [vmem:[%s2] sm:$0xff]
      %v447 = vld [vmem:[%s2 + $0x8] sm:$0xff]
      %v448 = vld [vmem:[%s2 + $0x10] sm:$0xff]
      %v449 = vld [vmem:[%s2 + $0x18] sm:$0xff]
      %v450 = vld [vmem:[%s2 + $0x20] sm:$0xff]
      %v451 = vld [vmem:[%s2 + $0x28] sm:$0xff]
      %v452 = vld [vmem:[%s2 + $0x30] sm:$0xff]
      %v453 = vld [vmem:[%s2 + $0x38] sm:$0xff]
      %v454 = vld [vmem:[%s3] sm:$0xff]
      %v455 = vld [vmem:[%s3 + $0x8] sm:$0xff]
      %v456 = vld [vmem:[%s3 + $0x10] sm:$0xff]
      %v457 = vld [vmem:[%s3 + $0x18] sm:$0xff]
      %v458 = vld [vmem:[%s3 + $0x20] sm:$0xff]
      %v459 = vld [vmem:[%s3 + $0x28] sm:$0xff]
      %v460 = vld [vmem:[%s3 + $0x30] sm:$0xff]
      %v461 = vld [vmem:[%s3 + $0x38] sm:$0xff]
      %vm462 = vcmask 523264
      %v464 = vsel %vm462, %v446, 0
      %v467 = vsel %vm462, %v447, 0
      %v470 = vsel %vm462, %v448, 0
      %v473 = vsel %vm462, %v449, 0
      %v476 = vsel %vm462, %v450, 0
      %v479 = vsel %vm462, %v451, 0
      %v482 = vsel %vm462, %v452, 0
      %v485 = vsel %vm462, %v453, 0
      %487 = vmatprep.subr.mxu0 0.0
      %488 = vmatpush1.msra.mxu0 %v408
      %489 = vmatprep.subr.mxu0 0.0
      %490 = vmatpush1.msra.mxu0 %v413
      %491 = vmatprep.subr.mxu0 0.0
      %492 = vmatpush1.msra.mxu0 %v418
      %493 = vmatprep.subr.mxu0 0.0
      %494 = vmatpush1.msra.mxu0 %v423
      %495 = vmatprep.subr.mxu0 0.0
      %496 = vmatpush1.msra.mxu0 %v428
      %497 = vmatprep.subr.mxu0 0.0
      %498 = vmatpush1.msra.mxu0 %v433
      %499 = vmatprep.subr.mxu0 0.0
      %500 = vmatpush1.msra.mxu0 %v438
      %501 = vmatprep.subr.mxu0 0.0
      %502 = vmatpush1.msra.mxu0 %v443
      %503 = vmatprep.subr.mxu0 0.0
      %504 = vmatpush1.msra.mxu0 0.0
      %505 = vmatprep.subr.mxu0 0.0
      %506 = vmatpush1.msra.mxu0 0.0
      %507 = vmatprep.subr.mxu0 0.0
      %508 = vmatpush1.msra.mxu0 0.0
      %509 = vmatprep.subr.mxu0 0.0
      %510 = vmatpush1.msra.mxu0 0.0
      %511 = vmatprep.subr.mxu0 0.0
      %512 = vmatpush1.msra.mxu0 0.0
      %513 = vmatprep.subr.mxu0 0.0
      %514 = vmatpush1.msra.mxu0 0.0
      %515 = vmatprep.subr.mxu0 0.0
      %516 = vmatpush1.msra.mxu0 0.0
      %517 = vmatprep.subr.mxu0 0.0
      %518 = vmatpush1.msra.mxu0 0.0
      %519 = vmatprep.subr.mxu0 0.0
      %520 = vmatpush1.msra.mxu0 0.0
      %521 = vmatprep.subr.mxu0 0.0
      %522 = vmatpush1.msra.mxu0 0.0
      %523 = vmatprep.subr.mxu0 0.0
      %524 = vmatpush1.msra.mxu0 0.0
      %525 = vmatprep.subr.mxu0 0.0
      %526 = vmatpush1.msra.mxu0 0.0
      %527 = vmatprep.subr.mxu0 0.0
      %528 = vmatpush1.msra.mxu0 0.0
      %529 = vmatprep.subr.mxu0 0.0
      %530 = vmatpush1.msra.mxu0 0.0
      %531 = vmatprep.subr.mxu0 0.0
      %532 = vmatpush1.msra.mxu0 0.0
      %533 = vmatprep.subr.mxu0 0.0
      %534 = vmatpush1.msra.mxu0 0.0
      %535 = vmatprep.subr.mxu0 0.0
      %536 = vmatpush1.msra.mxu0 0.0
      %537 = vmatprep.subr.mxu0 0.0
      %538 = vmatpush1.msra.mxu0 0.0
      %539 = vmatprep.subr.mxu0 0.0
      %540 = vmatpush1.msra.mxu0 0.0
      %541 = vmatprep.subr.mxu0 0.0
      %542 = vmatpush1.msra.mxu0 0.0
      %543 = vmatprep.subr.mxu0 0.0
      %544 = vmatpush1.msra.mxu0 0.0
      %545 = vmatprep.subr.mxu0 0.0
      %546 = vmatpush1.msra.mxu0 0.0
      %547 = vmatprep.subr.mxu0 0.0
      %548 = vmatpush1.msra.mxu0 0.0
      %549 = vmatprep.subr.mxu0 0.0
      %550 = vmatpush1.msra.mxu0 0.0
      %551 = vmatprep.mubr.f32.mxu0 0.0
      %552 = vmatmul.mubr.f32.gmra.mrb[0].mxu0 %v464
      %v553 = vpop.f32.mrb[0].mxu0
      %v554 = vadd.f32 %v454, %v553
      %v555 = vpop.f32.mrb[0].mxu0
      %556 = vmatprep.mubr.f32.mxu0 0.0
      %557 = vmatmul.mubr.f32.gmra.mrb[0].mxu0 %v467
      %v558 = vpop.f32.mrb[0].mxu0
      %v559 = vadd.f32 %v455, %v558
      %v560 = vpop.f32.mrb[0].mxu0
      %561 = vmatprep.mubr.f32.mxu0 0.0
      %562 = vmatmul.mubr.f32.gmra.mrb[0].mxu0 %v470
      %v563 = vpop.f32.mrb[0].mxu0
      %v564 = vadd.f32 %v456, %v563
      %v565 = vpop.f32.mrb[0].mxu0
      %566 = vmatprep.mubr.f32.mxu0 0.0
      %567 = vmatmul.mubr.f32.gmra.mrb[0].mxu0 %v473
      %v568 = vpop.f32.mrb[0].mxu0
      %v569 = vadd.f32 %v457, %v568
      %v570 = vpop.f32.mrb[0].mxu0
      %571 = vmatprep.mubr.f32.mxu0 0.0
      %572 = vmatmul.mubr.f32.gmra.mrb[0].mxu0 %v476
      %v573 = vpop.f32.mrb[0].mxu0
      %v574 = vadd.f32 %v458, %v573
      %v575 = vpop.f32.mrb[0].mxu0
      %576 = vmatprep.mubr.f32.mxu0 0.0
      %577 = vmatmul.mubr.f32.gmra.mrb[0].mxu0 %v479
      %v578 = vpop.f32.mrb[0].mxu0
      %v579 = vadd.f32 %v459, %v578
      %v580 = vpop.f32.mrb[0].mxu0
      %581 = vmatprep.mubr.f32.mxu0 0.0
      %582 = vmatmul.mubr.f32.gmra.mrb[0].mxu0 %v482
      %v583 = vpop.f32.mrb[0].mxu0
      %v584 = vadd.f32 %v460, %v583
      %v585 = vpop.f32.mrb[0].mxu0
      %586 = vmatprep.mubr.f32.mxu0 0.0
      %587 = vmatmul.mubr.f32.gmra.mrb[0].mxu0 %v485
      %v588 = vpop.f32.mrb[0].mxu0
      %v589 = vadd.f32 %v461, %v588
      %v590 = vpop.f32.mrb[0].mxu0
      %591 = vdwg.mxu0
      %vm592 = vcmp.gt.f32.partialorder %v554, 0.0
      %vm593 = vcmp.gt.f32.partialorder %v559, 0.0
      %vm594 = vcmp.gt.f32.partialorder %v564, 0.0
      %vm595 = vcmp.gt.f32.partialorder %v569, 0.0
      %vm596 = vcmp.gt.f32.partialorder %v574, 0.0
      %vm597 = vcmp.gt.f32.partialorder %v579, 0.0
      %vm598 = vcmp.gt.f32.partialorder %v584, 0.0
      %vm599 = vcmp.gt.f32.partialorder %v589, 0.0
      %v600 = vmul.f32 %v554, 0.2
      %v601 = vmul.f32 %v559, 0.2
      %v602 = vmul.f32 %v564, 0.2
      %v603 = vmul.f32 %v569, 0.2
      %v604 = vmul.f32 %v574, 0.2
      %v605 = vmul.f32 %v579, 0.2
      %v606 = vmul.f32 %v584, 0.2
      %v607 = vmul.f32 %v589, 0.2
      %v608 = vsel %vm592, %v554, %v600
      %v609 = vsel %vm593, %v559, %v601
      %v610 = vsel %vm594, %v564, %v602
      %v611 = vsel %vm595, %v569, %v603
      %v612 = vsel %vm596, %v574, %v604
      %v613 = vsel %vm597, %v579, %v605
      %v614 = vsel %vm598, %v584, %v606
      %v615 = vsel %vm599, %v589, %v607
      %vm616 = vcmask 64512
      %617 = vst.msk [vmem:[%s305] sm:$0xff] %vm616, %v608
      %618 = vst.msk [vmem:[%s305 + $0x8] sm:$0xff] %vm616, %v609
      %619 = vst.msk [vmem:[%s305 + $0x10] sm:$0xff] %vm616, %v610
      %620 = vst.msk [vmem:[%s305 + $0x18] sm:$0xff] %vm616, %v611
      %621 = vst.msk [vmem:[%s305 + $0x20] sm:$0xff] %vm616, %v612
      %622 = vst.msk [vmem:[%s305 + $0x28] sm:$0xff] %vm616, %v613
      %623 = vst.msk [vmem:[%s305 + $0x30] sm:$0xff] %vm616, %v614
      %624 = vst.msk [vmem:[%s305 + $0x38] sm:$0xff] %vm616, %v615
      %p625 = scmp.lt.s32.totalorder %s19, 1
      %s626 = scalar_select %p625, %s19, 1
      %s627 = smul.addr %s626, 8
      %s628 = smul.addr %s627, 8
      %s629 = scalar_lea.vmem %s8, %s628
      // Predicated region
      $region53: #{tpu_custom_call.1} parent=51 // pred_check
        %p630 = pneg %p210
      $region54: #{tpu_custom_call.1} parent=51 // pred_check_branch
        %632 = sbr.rel (%p630) target = $region56
      $region55: #{tpu_custom_call.1} parent=51 // pred_region
        _
      $region56: #{tpu_custom_call.1} parent=51 // pred_fallthru
        _
    $region52: #{tpu_custom_call.1} parent=5 // pred_fallthru
      _
    %p633 = scmp.le.s32.totalorder 2, %s14
    // Predicated region
    $region57: #{tpu_custom_call.1} parent=5 // pred_check
      %p634 = pneg %p633
    $region58: #{tpu_custom_call.1} parent=5 // pred_check_branch
      %636 = sbr.rel (%p634) target = $region60
    $region59: #{tpu_custom_call.1} parent=5 // pred_region
      %s637 = ssub.s32 %s14, 2
      // Predicated region
      $region61: #{tpu_custom_call.1} parent=59 // pred_check
        %p638 = pneg %p216
      $region62: #{tpu_custom_call.1} parent=59 // pred_check_branch
        %640 = sbr.rel (%p638) target = $region64
      $region63: #{tpu_custom_call.1} parent=59 // pred_region
        %p641 = scmp.lt.s32.totalorder %s20, 1
        %s642 = scalar_select %p641, %s20, 1
        %s643 = smul.addr %s642, 8
        %s644 = smul.addr %s643, 8
        %s645 = scalar_lea.vmem %s8, %s644
      $region64: #{tpu_custom_call.1} parent=59 // pred_fallthru
        _
    $region60: #{tpu_custom_call.1} parent=5 // pred_fallthru
      _
  $region6: #{tpu_custom_call.1} parent=0 // loop_footer
    %s18 = sadd.s32 1, %s14
  $region7: #{tpu_custom_call.1} parent=0 // loop_footer_branch
    %13 = sbr.rel target = $region3
  $region8: #{tpu_custom_call.1} parent=0 // loop_exit
    _

</llo_original>
